<compile_context>
chip_gen: v7x
topology: tpu7x:2x2x1
jax: 0.10.0
libtpu: 0.0.40
codegen_flags: <defaults>
</compile_context>

<pallas_src>
import jax
import jax.numpy as jnp
from jax.experimental import pallas as pl
from jax.experimental.pallas import tpu as pltpu


def ffnn_kernel(x_ref, w1_ref, b1_ref, w2_ref, b2_ref, out_ref):
    """Whole forward pass in one invocation; all refs are VMEM-resident."""
    xb = x_ref[...].astype(jnp.bfloat16)                      # (B, D) bf16 MXU operand
    # First Linear: [B, D] @ [D, Hp] on the MXU, f32 accumulate.
    h = jnp.dot(xb, w1_ref[...], preferred_element_type=jnp.float32)
    h = jax.nn.sigmoid(h + b1_ref[...])                       # f32 bias add + EUP sigmoid
    # Second Linear: [B, Hp] @ [Hp, Op].
    logits = jnp.dot(h.astype(jnp.bfloat16), w2_ref[...],
                     preferred_element_type=jnp.float32)
    out_ref[...] = (logits + b2_ref[...]).astype(out_ref.dtype)


def _pad_to(n, m):
    return ((n + m - 1) // m) * m


def prepare_ffnn_params(w1, b1, w2, b2):
    """One-time parameter prep: lane-pad H and O to 128, cast matmul weights to bf16.

    Zero padding is mathematically exact: padded hidden lanes produce sigmoid(0)=0.5
    but multiply all-zero W2 rows; padded output lanes are sliced off downstream.
    Weights are stored as [in_features, out_features] (PyTorch weight.T) so the
    kernel computes y = x @ W + b directly on the MXU.
    """
    D, H = w1.shape
    O = w2.shape[1]
    Hp = _pad_to(H, 128)
    Op = _pad_to(O, 128)
    bf16, f32 = jnp.bfloat16, jnp.float32
    w1_p = jnp.zeros((D, Hp), bf16).at[:, :H].set(w1.astype(bf16))
    b1_p = jnp.zeros((1, Hp), f32).at[:, :H].set(b1.reshape(1, H).astype(f32))
    w2_p = jnp.zeros((Hp, Op), bf16).at[:H, :O].set(w2.astype(bf16))
    b2_p = jnp.zeros((1, Op), f32).at[:, :O].set(b2.reshape(1, O).astype(f32))
    return w1_p, b1_p, w2_p, b2_p


@jax.jit
def ffnn_forward_padded(x_nchw, w1_p, b1_p, w2_p, b2_p):
    """Returns lane-padded logits (B, Op); slice [:, :out_features] at the consumer."""
    B = x_nchw.shape[0]
    x = x_nchw.reshape(B, -1).astype(jnp.float32)             # nn.Flatten()
    D = x.shape[1]
    assert w1_p.shape[0] == D, "flattened image size must match W1 rows"
    Hp = w1_p.shape[1]
    Op = w2_p.shape[1]

    cost = pl.CostEstimate(
        flops=2 * B * D * Hp + 2 * B * Hp * Op,
        transcendentals=B * Hp,                                # sigmoid exps
        bytes_accessed=(4 * B * D + 2 * D * Hp + 4 * Hp
                        + 2 * Hp * Op + 4 * Op + 4 * B * Op),
    )

    # grid=(1,): everything fits trivially in VMEM, single un-tiled invocation.
    # Full-array block shapes are legal even when not (8,128)-aligned; Mosaic
    # pads in-vreg.  Output last dim Op=128 keeps the store lane-dense.
    return pl.pallas_call(
        ffnn_kernel,
        out_shape=jax.ShapeDtypeStruct((B, Op), jnp.float32),
        grid_spec=pltpu.PrefetchScalarGridSpec(
            num_scalar_prefetch=0,
            grid=(1,),
            in_specs=[
                pl.BlockSpec((B, D), lambda i: (0, 0)),        # x, unpadded f32
                pl.BlockSpec((D, Hp), lambda i: (0, 0)),       # W1, bf16
                pl.BlockSpec((1, Hp), lambda i: (0, 0)),       # b1, f32
                pl.BlockSpec((Hp, Op), lambda i: (0, 0)),      # W2, bf16
                pl.BlockSpec((1, Op), lambda i: (0, 0)),       # b2, f32
            ],
            out_specs=pl.BlockSpec((B, Op), lambda i: (0, 0)),
        ),
        compiler_params=pltpu.CompilerParams(
            dimension_semantics=("arbitrary",),
        ),
        cost_estimate=cost,
    )(x, w1_p, b1_p, w2_p, b2_p)


def _init_linear(key, fan_in, fan_out):
    """Deterministic init mimicking torch.nn.Linear (uniform +-1/sqrt(fan_in))."""
    kw, kb = jax.random.split(key)
    bound = 1.0 / jnp.sqrt(fan_in)
    w = jax.random.uniform(kw, (fan_in, fan_out), jnp.float32, -bound, bound)
    b = jax.random.uniform(kb, (1, fan_out), jnp.float32, -bound, bound)
    return w, b


if __name__ == "__main__":
    # Small shapes consistent with the module: NNParams.resize scaled down to 16,
    # imageDepth=2 -> imageSize = 2*16*16 = 512, hidden=10, targetLabelSize=2.
    batch = 2
    depth = 2          # NNParams.imageDepth (channels)
    size = 16          # scaled-down NNParams.resize
    image_size = depth * size * size   # 512
    hidden = 10
    n_labels = 2       # NNParams.targetLabelSize

    key = jax.random.PRNGKey(0)
    kx, k1, k2 = jax.random.split(key, 3)

    x = jax.random.normal(kx, (batch, depth, size, size), jnp.float32)
    w1, b1 = _init_linear(k1, image_size, hidden)
    w2, b2 = _init_linear(k2, hidden, n_labels)

    # One-time parameter prep (padding + bf16 cast), hoisted off the per-call path.
    params = jax.block_until_ready(prepare_ffnn_params(w1, b1, w2, b2))

    out_padded = jax.block_until_ready(ffnn_forward_padded(x, *params))
    logits = out_padded[:, :n_labels]   # deferred slice at the consumer

    # Pure-JAX f32 reference; tolerance loosened for bf16 matmul operands.
    x_flat = x.reshape(batch, -1)
    ref = jax.nn.sigmoid(x_flat @ w1 + b1) @ w2 + b2
    assert logits.shape == (batch, n_labels)
    assert jnp.allclose(logits, ref, atol=5e-2, rtol=5e-2), "mismatch vs reference"

    print("KERNEL_OK")
</pallas_src>

<mosaic_0001>
module attributes {stable_mosaic.version = 11 : i64} {
  func.func @ffnn_kernel(%arg0: i32, %arg1: memref<2x512xf32, #tpu.memory_space<vmem>>, %arg2: memref<512x128xbf16, #tpu.memory_space<vmem>>, %arg3: memref<1x128xf32, #tpu.memory_space<vmem>>, %arg4: memref<128x128xbf16, #tpu.memory_space<vmem>>, %arg5: memref<1x128xf32, #tpu.memory_space<vmem>>, %arg6: memref<2x128xf32, #tpu.memory_space<vmem>>) attributes {dimension_semantics = [#tpu.dimension_semantics<arbitrary>], iteration_bounds = array<i64: 1>, scalar_prefetch = 0 : i64, scratch_operands = 0 : i64, tpu.core_type = #tpu.core_type<tc>, window_params = [{pipeline_mode = #tpu.pipeline_mode<synchronous>, transform_indices = @transform_0, window_bounds = array<i64: 2, 512>}, {pipeline_mode = #tpu.pipeline_mode<synchronous>, transform_indices = @transform_1, window_bounds = array<i64: 512, 128>}, {pipeline_mode = #tpu.pipeline_mode<synchronous>, transform_indices = @transform_2, window_bounds = array<i64: 1, 128>}, {pipeline_mode = #tpu.pipeline_mode<synchronous>, transform_indices = @transform_3, window_bounds = array<i64: 128, 128>}, {pipeline_mode = #tpu.pipeline_mode<synchronous>, transform_indices = @transform_4, window_bounds = array<i64: 1, 128>}, {pipeline_mode = #tpu.pipeline_mode<synchronous>, transform_indices = @transform_5, window_bounds = array<i64: 2, 128>}]} {
    %c0 = arith.constant 0 : index
    %c0_0 = arith.constant 0 : index
    %0 = vector.load %arg1[%c0, %c0_0] : memref<2x512xf32, #tpu.memory_space<vmem>>, vector<2x512xf32>
    %1 = arith.truncf %0 : vector<2x512xf32> to vector<2x512xbf16>
    %c0_1 = arith.constant 0 : index
    %c0_2 = arith.constant 0 : index
    %2 = vector.load %arg2[%c0_1, %c0_2] : memref<512x128xbf16, #tpu.memory_space<vmem>>, vector<512x128xbf16>
    %cst = arith.constant dense<0.000000e+00> : vector<2x128xf32>
    %3 = tpu.matmul %1, %2, %cst {dimension_numbers = #tpu.dot_dimension_numbers<[1], [0], [0], [1], [0, 0, 1, 1], [], []>} : vector<2x512xbf16>, vector<512x128xbf16>, vector<2x128xf32> -> vector<2x128xf32>
    %c0_3 = arith.constant 0 : index
    %c0_4 = arith.constant 0 : index
    %4 = vector.load %arg3[%c0_3, %c0_4] : memref<1x128xf32, #tpu.memory_space<vmem>>, vector<1x128xf32>
    %5 = vector.broadcast %4 : vector<1x128xf32> to vector<2x128xf32>
    %6 = arith.addf %3, %5 : vector<2x128xf32>
    %7 = arith.negf %6 : vector<2x128xf32>
    %8 = math.exp %7 : vector<2x128xf32>
    %cst_5 = arith.constant 1.000000e+00 : f32
    %9 = vector.broadcast %cst_5 : f32 to vector<2x128xf32>
    %10 = arith.addf %9, %8 : vector<2x128xf32>
    %11 = arith.divf %9, %10 : vector<2x128xf32>
    %12 = arith.truncf %11 : vector<2x128xf32> to vector<2x128xbf16>
    %c0_6 = arith.constant 0 : index
    %c0_7 = arith.constant 0 : index
    %13 = vector.load %arg4[%c0_6, %c0_7] : memref<128x128xbf16, #tpu.memory_space<vmem>>, vector<128x128xbf16>
    %cst_8 = arith.constant dense<0.000000e+00> : vector<2x128xf32>
    %14 = tpu.matmul %12, %13, %cst_8 {dimension_numbers = #tpu.dot_dimension_numbers<[1], [0], [0], [1], [0, 0, 1, 1], [], []>} : vector<2x128xbf16>, vector<128x128xbf16>, vector<2x128xf32> -> vector<2x128xf32>
    %c0_9 = arith.constant 0 : index
    %c0_10 = arith.constant 0 : index
    %15 = vector.load %arg5[%c0_9, %c0_10] : memref<1x128xf32, #tpu.memory_space<vmem>>, vector<1x128xf32>
    %16 = vector.broadcast %15 : vector<1x128xf32> to vector<2x128xf32>
    %17 = arith.addf %14, %16 : vector<2x128xf32>
    %c0_11 = arith.constant 0 : index
    %c0_12 = arith.constant 0 : index
    %18 = vector.load %arg6[%c0_11, %c0_12] : memref<2x128xf32, #tpu.memory_space<vmem>>, vector<2x128xf32>
    tpu.vector_store %arg6[%c0_11, %c0_12], %17 {strides = array<i32>} : memref<2x128xf32, #tpu.memory_space<vmem>>, vector<2x128xf32>,
    return
  }
  func.func @transform_0(%arg0: i32) -> (i32, i32) {
    %c0_i32 = arith.constant 0 : i32
    %c0_i32_0 = arith.constant 0 : i32
    %c0_i32_1 = arith.constant 0 : i32
    return %c0_i32, %c0_i32_0 : i32, i32
  }
  func.func @transform_1(%arg0: i32) -> (i32, i32) {
    %c0_i32 = arith.constant 0 : i32
    %c0_i32_0 = arith.constant 0 : i32
    %c0_i32_1 = arith.constant 0 : i32
    return %c0_i32, %c0_i32_0 : i32, i32
  }
  func.func @transform_2(%arg0: i32) -> (i32, i32) {
    %c0_i32 = arith.constant 0 : i32
    %c0_i32_0 = arith.constant 0 : i32
    %c0_i32_1 = arith.constant 0 : i32
    return %c0_i32, %c0_i32_0 : i32, i32
  }
  func.func @transform_3(%arg0: i32) -> (i32, i32) {
    %c0_i32 = arith.constant 0 : i32
    %c0_i32_0 = arith.constant 0 : i32
    %c0_i32_1 = arith.constant 0 : i32
    return %c0_i32, %c0_i32_0 : i32, i32
  }
  func.func @transform_4(%arg0: i32) -> (i32, i32) {
    %c0_i32 = arith.constant 0 : i32
    %c0_i32_0 = arith.constant 0 : i32
    %c0_i32_1 = arith.constant 0 : i32
    return %c0_i32, %c0_i32_0 : i32, i32
  }
  func.func @transform_5(%arg0: i32) -> (i32, i32) {
    %c0_i32 = arith.constant 0 : i32
    %c0_i32_0 = arith.constant 0 : i32
    %c0_i32_1 = arith.constant 0 : i32
    return %c0_i32, %c0_i32_0 : i32, i32
  }
}

</mosaic_0001>

<llo_original>
// kernel: ffnn_forward_padded.1
$region0: #{ffnn_forward_padded.1}
  #allocation0 [shape = 'u32[]', space=smem, size = 0x4, offset = 0x4, fixed_abs, tag = 'smem constant byte address 0x4 - core index']
  #allocation1 [shape = 'u32[144,128]{1,0:T(1,128)}', space=vmem, size = 0x12000, scoped, tag = 'internal scratch']
  %s0 = inlined_call_operand.vmem [shape: f32[2,512], index: 0, kind: input, shape index: {}]
  %s1 = inlined_call_operand.hbm [shape: bf16[512,128], index: 1, kind: input, shape index: {}]
  %s2 = inlined_call_operand.vmem [shape: f32[1,128], index: 2, kind: input, shape index: {}]
  %s3 = inlined_call_operand.vmem [shape: bf16[128,128], index: 3, kind: input, shape index: {}]
  %s4 = inlined_call_operand.vmem [shape: f32[1,128], index: 4, kind: input, shape index: {}]
  %s5 = inlined_call_operand.hbm [shape: f32[2,128], index: 5, kind: output, shape index: {}]
  %s6 = sld [smem:[#allocation0]]
  $region34: #{ffnn_forward_padded.1} parent=0
    _
  %s8 = ssub.s32 1, %s6
  %s9 = scalar_select 0, %s8, %s6
  $region1: #{ffnn_forward_padded.1} parent=0
    #allocation2 [shape = 'u8[131072]{0}', space=vmem, size = 0x20000, scoped, tag = 'input window, operand 1, single buffered']
    #allocation3 [shape = 's32[1]{0}', space=sflag, size = 0x4, scoped, tag = 'scoped memory for ffnn_forward_padded.1']
    #allocation4 [shape = 's32[1]{0}', space=sflag, size = 0x4, scoped, tag = 'scoped memory for ffnn_forward_padded.1']
    #allocation5 [shape = 'u8[1024]{0}', space=vmem, size = 0x400, scoped, tag = 'output window, operand 0, single buffered']
    %10 = vsyncpa [#allocation3], 0
    %11 = vsyncpa [#allocation4], 0
    // Predicated region
    $region2: #{ffnn_forward_padded.1} parent=1 // pred_check
      _
    $region3: #{ffnn_forward_padded.1} parent=1 // pred_check_branch
      %13 = sbr.rel (0) target = $region5
    $region4: #{ffnn_forward_padded.1} parent=1 // pred_region
      _
    $region5: #{ffnn_forward_padded.1} parent=1 // pred_fallthru
      _
    // Predicated region
    $region6: #{ffnn_forward_padded.1} parent=1 // pred_check
      _
    $region7: #{ffnn_forward_padded.1} parent=1 // pred_check_branch
      %15 = sbr.rel (0) target = $region9
    $region8: #{ffnn_forward_padded.1} parent=1 // pred_region
      %s17 = ssub.s32 4096, 4096
      %18 = vsyncadd [#allocation3], %s17
      %s19 = sshll.u32 [#allocation2], 4
      %s20 = int_to_ptr.vmem [resolvable:$true] %s19
      %25 = dma.hbm_to_vmem [thread:$0]  %s1, 4096, %s20, [#allocation3], 64, 64, 4
    $region9: #{ffnn_forward_padded.1} parent=1 // pred_fallthru
      _
    // Predicated region
    $region10: #{ffnn_forward_padded.1} parent=1 // pred_check
      _
    $region11: #{ffnn_forward_padded.1} parent=1 // pred_check_branch
      %27 = sbr.rel (0) target = $region13
    $region12: #{ffnn_forward_padded.1} parent=1 // pred_region
      _
    $region13: #{ffnn_forward_padded.1} parent=1 // pred_fallthru
      _
    // Predicated region
    $region14: #{ffnn_forward_padded.1} parent=1 // pred_check
      _
    $region15: #{ffnn_forward_padded.1} parent=1 // pred_check_branch
      %29 = sbr.rel (0) target = $region17
    $region16: #{ffnn_forward_padded.1} parent=1 // pred_region
      _
    $region17: #{ffnn_forward_padded.1} parent=1 // pred_fallthru
      _
    // Predicated region
    $region18: #{ffnn_forward_padded.1} parent=1 // pred_check
      _
    $region19: #{ffnn_forward_padded.1} parent=1 // pred_check_branch
      %31 = sbr.rel (0) target = $region21
    $region20: #{ffnn_forward_padded.1} parent=1 // pred_region
      _
    $region21: #{ffnn_forward_padded.1} parent=1 // pred_fallthru
      _
    // Predicated region
    $region22: #{ffnn_forward_padded.1} parent=1 // pred_check
      _
    $region23: #{ffnn_forward_padded.1} parent=1 // pred_check_branch
      %33 = sbr.rel (0) target = $region25
    $region24: #{ffnn_forward_padded.1} parent=1 // pred_region
      %34 = dma.done [#allocation3], 4096
    $region25: #{ffnn_forward_padded.1} parent=1 // pred_fallthru
      _
    %v36 = vld [vmem:[%s0] sm:$0xff]
    %v38 = vcombine.high %v36, %v36
    %v40 = vunpack.c.l.s4 1983009808
    %v41 = vunpack.c.0.s8 %v40
    %v42 = vlaneseq
    %v43 = vshrl.u32 %v42, 7
    %v44 = vsub.s32 %v41, %v43
    %v45 = vrot.slane %v36, %v44
    %v47 = vunpack.c.l.s4 1983009808
    %v48 = vunpack.c.0.s8 %v47
    %v49 = vlaneseq
    %v50 = vshrl.u32 %v49, 7
    %v51 = vsub.s32 %v48, %v50
    %v52 = vrot.slane %v38, %v51
    %v53 = vcombine.high %v45, %v45
    %v54 = vcombine.high %v52, %v52
    %v59 = vpack.c.bf16 %v45, %v45
    %v60 = vpack.c.bf16 %v53, %v53
    %v61 = vpack.c.bf16 %v52, %v52
    %v62 = vpack.c.bf16 %v54, %v54
    %v63 = vld [vmem:[#allocation2] sm:$0xf]
    %v64 = vld [vmem:[#allocation2 + $0x4] sm:$0xf]
    %v65 = vld [vmem:[#allocation2 + $0x8] sm:$0xf]
    %v66 = vld [vmem:[#allocation2 + $0xc] sm:$0xf]
    %v67 = vld [vmem:[#allocation2 + $0x10] sm:$0xf]
    %v68 = vld [vmem:[#allocation2 + $0x14] sm:$0xf]
    %v69 = vld [vmem:[#allocation2 + $0x18] sm:$0xf]
    %v70 = vld [vmem:[#allocation2 + $0x1c] sm:$0xf]
    %v71 = vld [vmem:[#allocation2 + $0x20] sm:$0xf]
    %v72 = vld [vmem:[#allocation2 + $0x24] sm:$0xf]
    %v73 = vld [vmem:[#allocation2 + $0x28] sm:$0xf]
    %v74 = vld [vmem:[#allocation2 + $0x2c] sm:$0xf]
    %v75 = vld [vmem:[#allocation2 + $0x30] sm:$0xf]
    %v76 = vld [vmem:[#allocation2 + $0x34] sm:$0xf]
    %v77 = vld [vmem:[#allocation2 + $0x38] sm:$0xf]
    %v78 = vld [vmem:[#allocation2 + $0x3c] sm:$0xf]
    %v79 = vld [vmem:[#allocation2 + $0x40] sm:$0xf]
    %v80 = vld [vmem:[#allocation2 + $0x44] sm:$0xf]
    %v81 = vld [vmem:[#allocation2 + $0x48] sm:$0xf]
    %v82 = vld [vmem:[#allocation2 + $0x4c] sm:$0xf]
    %v83 = vld [vmem:[#allocation2 + $0x50] sm:$0xf]
    %v84 = vld [vmem:[#allocation2 + $0x54] sm:$0xf]
    %v85 = vld [vmem:[#allocation2 + $0x58] sm:$0xf]
    %v86 = vld [vmem:[#allocation2 + $0x5c] sm:$0xf]
    %v87 = vld [vmem:[#allocation2 + $0x60] sm:$0xf]
    %v88 = vld [vmem:[#allocation2 + $0x64] sm:$0xf]
    %v89 = vld [vmem:[#allocation2 + $0x68] sm:$0xf]
    %v90 = vld [vmem:[#allocation2 + $0x6c] sm:$0xf]
    %v91 = vld [vmem:[#allocation2 + $0x70] sm:$0xf]
    %v92 = vld [vmem:[#allocation2 + $0x74] sm:$0xf]
    %v93 = vld [vmem:[#allocation2 + $0x78] sm:$0xf]
    %v94 = vld [vmem:[#allocation2 + $0x7c] sm:$0xf]
    %v95 = vld [vmem:[#allocation2 + $0x80] sm:$0xf]
    %v96 = vld [vmem:[#allocation2 + $0x84] sm:$0xf]
    %v97 = vld [vmem:[#allocation2 + $0x88] sm:$0xf]
    %v98 = vld [vmem:[#allocation2 + $0x8c] sm:$0xf]
    %v99 = vld [vmem:[#allocation2 + $0x90] sm:$0xf]
    %v100 = vld [vmem:[#allocation2 + $0x94] sm:$0xf]
    %v101 = vld [vmem:[#allocation2 + $0x98] sm:$0xf]
    %v102 = vld [vmem:[#allocation2 + $0x9c] sm:$0xf]
    %v103 = vld [vmem:[#allocation2 + $0xa0] sm:$0xf]
    %v104 = vld [vmem:[#allocation2 + $0xa4] sm:$0xf]
    %v105 = vld [vmem:[#allocation2 + $0xa8] sm:$0xf]
    %v106 = vld [vmem:[#allocation2 + $0xac] sm:$0xf]
    %v107 = vld [vmem:[#allocation2 + $0xb0] sm:$0xf]
    %v108 = vld [vmem:[#allocation2 + $0xb4] sm:$0xf]
    %v109 = vld [vmem:[#allocation2 + $0xb8] sm:$0xf]
    %v110 = vld [vmem:[#allocation2 + $0xbc] sm:$0xf]
    %v111 = vld [vmem:[#allocation2 + $0xc0] sm:$0xf]
    %v112 = vld [vmem:[#allocation2 + $0xc4] sm:$0xf]
    %v113 = vld [vmem:[#allocation2 + $0xc8] sm:$0xf]
    %v114 = vld [vmem:[#allocation2 + $0xcc] sm:$0xf]
    %v115 = vld [vmem:[#allocation2 + $0xd0] sm:$0xf]
    %v116 = vld [vmem:[#allocation2 + $0xd4] sm:$0xf]
    %v117 = vld [vmem:[#allocation2 + $0xd8] sm:$0xf]
    %v118 = vld [vmem:[#allocation2 + $0xdc] sm:$0xf]
    %v119 = vld [vmem:[#allocation2 + $0xe0] sm:$0xf]
    %v120 = vld [vmem:[#allocation2 + $0xe4] sm:$0xf]
    %v121 = vld [vmem:[#allocation2 + $0xe8] sm:$0xf]
    %v122 = vld [vmem:[#allocation2 + $0xec] sm:$0xf]
    %v123 = vld [vmem:[#allocation2 + $0xf0] sm:$0xf]
    %v124 = vld [vmem:[#allocation2 + $0xf4] sm:$0xf]
    %v125 = vld [vmem:[#allocation2 + $0xf8] sm:$0xf]
    %v126 = vld [vmem:[#allocation2 + $0xfc] sm:$0xf]
    %v127 = vld [vmem:[%s2] sm:$0x1]
    %v129 = vlaneseq
    %v130 = vshrl.u32 %v129, 7
    %v131 = vsub.s32 0, %v130
    %v132 = vrot.slane %v127, %v131
    %v198 = vunpack.c.l.b16 %v63
    %v199 = vunpack.c.l.b16 %v64
    %v200 = vunpack.c.l.b16 %v65
    %v201 = vunpack.c.l.b16 %v66
    %v202 = vunpack.c.l.b16 %v67
    %v203 = vunpack.c.l.b16 %v68
    %v204 = vunpack.c.l.b16 %v69
    %v205 = vunpack.c.l.b16 %v70
    %v206 = vunpack.c.l.b16 %v71
    %v207 = vunpack.c.l.b16 %v72
    %v208 = vunpack.c.l.b16 %v73
    %v209 = vunpack.c.l.b16 %v74
    %v210 = vunpack.c.l.b16 %v75
    %v211 = vunpack.c.l.b16 %v76
    %v212 = vunpack.c.l.b16 %v77
    %v213 = vunpack.c.l.b16 %v78
    %v214 = vunpack.c.l.b16 %v79
    %v215 = vunpack.c.l.b16 %v80
    %v216 = vunpack.c.l.b16 %v81
    %v217 = vunpack.c.l.b16 %v82
    %v218 = vunpack.c.l.b16 %v83
    %v219 = vunpack.c.l.b16 %v84
    %v220 = vunpack.c.l.b16 %v85
    %v221 = vunpack.c.l.b16 %v86
    %v222 = vunpack.c.l.b16 %v87
    %v223 = vunpack.c.l.b16 %v88
    %v224 = vunpack.c.l.b16 %v89
    %v225 = vunpack.c.l.b16 %v90
    %v226 = vunpack.c.l.b16 %v91
    %v227 = vunpack.c.l.b16 %v92
    %v228 = vunpack.c.l.b16 %v93
    %v229 = vunpack.c.l.b16 %v94
    %v230 = vunpack.c.l.b16 %v95
    %v231 = vunpack.c.l.b16 %v96
    %v232 = vunpack.c.l.b16 %v97
    %v233 = vunpack.c.l.b16 %v98
    %v234 = vunpack.c.l.b16 %v99
    %v235 = vunpack.c.l.b16 %v100
    %v236 = vunpack.c.l.b16 %v101
    %v237 = vunpack.c.l.b16 %v102
    %v238 = vunpack.c.l.b16 %v103
    %v239 = vunpack.c.l.b16 %v104
    %v240 = vunpack.c.l.b16 %v105
    %v241 = vunpack.c.l.b16 %v106
    %v242 = vunpack.c.l.b16 %v107
    %v243 = vunpack.c.l.b16 %v108
    %v244 = vunpack.c.l.b16 %v109
    %v245 = vunpack.c.l.b16 %v110
    %v246 = vunpack.c.l.b16 %v111
    %v247 = vunpack.c.l.b16 %v112
    %v248 = vunpack.c.l.b16 %v113
    %v249 = vunpack.c.l.b16 %v114
    %v250 = vunpack.c.l.b16 %v115
    %v251 = vunpack.c.l.b16 %v116
    %v252 = vunpack.c.l.b16 %v117
    %v253 = vunpack.c.l.b16 %v118
    %v254 = vunpack.c.l.b16 %v119
    %v255 = vunpack.c.l.b16 %v120
    %v256 = vunpack.c.l.b16 %v121
    %v257 = vunpack.c.l.b16 %v122
    %v258 = vunpack.c.l.b16 %v123
    %v259 = vunpack.c.l.b16 %v124
    %v260 = vunpack.c.l.b16 %v125
    %v261 = vunpack.c.l.b16 %v126
    %v262 = vpack.c.b16 %v199, %v198
    %v263 = vpack.c.b16 %v201, %v200
    %v264 = vpack.c.b16 %v203, %v202
    %v265 = vpack.c.b16 %v205, %v204
    %v266 = vpack.c.b16 %v207, %v206
    %v267 = vpack.c.b16 %v209, %v208
    %v268 = vpack.c.b16 %v211, %v210
    %v269 = vpack.c.b16 %v213, %v212
    %v270 = vpack.c.b16 %v215, %v214
    %v271 = vpack.c.b16 %v217, %v216
    %v272 = vpack.c.b16 %v219, %v218
    %v273 = vpack.c.b16 %v221, %v220
    %v274 = vpack.c.b16 %v223, %v222
    %v275 = vpack.c.b16 %v225, %v224
    %v276 = vpack.c.b16 %v227, %v226
    %v277 = vpack.c.b16 %v229, %v228
    %v278 = vpack.c.b16 %v231, %v230
    %v279 = vpack.c.b16 %v233, %v232
    %v280 = vpack.c.b16 %v235, %v234
    %v281 = vpack.c.b16 %v237, %v236
    %v282 = vpack.c.b16 %v239, %v238
    %v283 = vpack.c.b16 %v241, %v240
    %v284 = vpack.c.b16 %v243, %v242
    %v285 = vpack.c.b16 %v245, %v244
    %v286 = vpack.c.b16 %v247, %v246
    %v287 = vpack.c.b16 %v249, %v248
    %v288 = vpack.c.b16 %v251, %v250
    %v289 = vpack.c.b16 %v253, %v252
    %v290 = vpack.c.b16 %v255, %v254
    %v291 = vpack.c.b16 %v257, %v256
    %v292 = vpack.c.b16 %v259, %v258
    %v293 = vpack.c.b16 %v261, %v260
    %326 = vmatprep.subr.bf16.mxu0 0
    %327 = vmatpush1.bf16.msra.mxu0 %v262
    %328 = vmatprep.subr.bf16.mxu0 0
    %329 = vmatpush1.bf16.msra.mxu0 %v263
    %330 = vmatprep.subr.bf16.mxu0 0
    %331 = vmatpush1.bf16.msra.mxu0 %v264
    %332 = vmatprep.subr.bf16.mxu0 0
    %333 = vmatpush1.bf16.msra.mxu0 %v265
    %334 = vmatprep.subr.bf16.mxu0 0
    %335 = vmatpush1.bf16.msra.mxu0 %v266
    %336 = vmatprep.subr.bf16.mxu0 0
    %337 = vmatpush1.bf16.msra.mxu0 %v267
    %338 = vmatprep.subr.bf16.mxu0 0
    %339 = vmatpush1.bf16.msra.mxu0 %v268
    %340 = vmatprep.subr.bf16.mxu0 0
    %341 = vmatpush1.bf16.msra.mxu0 %v269
    %342 = vmatprep.subr.bf16.mxu0 0
    %343 = vmatpush1.bf16.msra.mxu0 %v270
    %344 = vmatprep.subr.bf16.mxu0 0
    %345 = vmatpush1.bf16.msra.mxu0 %v271
    %346 = vmatprep.subr.bf16.mxu0 0
    %347 = vmatpush1.bf16.msra.mxu0 %v272
    %348 = vmatprep.subr.bf16.mxu0 0
    %349 = vmatpush1.bf16.msra.mxu0 %v273
    %350 = vmatprep.subr.bf16.mxu0 0
    %351 = vmatpush1.bf16.msra.mxu0 %v274
    %352 = vmatprep.subr.bf16.mxu0 0
    %353 = vmatpush1.bf16.msra.mxu0 %v275
    %354 = vmatprep.subr.bf16.mxu0 0
    %355 = vmatpush1.bf16.msra.mxu0 %v276
    %356 = vmatprep.subr.bf16.mxu0 0
    %357 = vmatpush1.bf16.msra.mxu0 %v277
    %358 = vmatprep.mubr.bf16.mxu0 %v60
    %359 = vmatmul.mubr.bf16.gmra.mrb[0].mxu0 %v59
    %v360 = vpop.f32.mrb[0].mxu0
    %v361 = vadd.f32 %v132, %v360
    %v362 = vpop.f32.mrb[0].mxu0
    %v363 = vpop.f32.mrb[0].mxu0
    %v364 = vpop.f32.mrb[0].mxu0
    %365 = vdwg.mxu0
    %366 = vmatprep.subr.bf16.mxu0 0
    %367 = vmatpush1.bf16.msra.mxu0 %v278
    %368 = vmatprep.subr.bf16.mxu0 0
    %369 = vmatpush1.bf16.msra.mxu0 %v279
    %370 = vmatprep.subr.bf16.mxu0 0
    %371 = vmatpush1.bf16.msra.mxu0 %v280
    %372 = vmatprep.subr.bf16.mxu0 0
    %373 = vmatpush1.bf16.msra.mxu0 %v281
    %374 = vmatprep.subr.bf16.mxu0 0
    %375 = vmatpush1.bf16.msra.mxu0 %v282
    %376 = vmatprep.subr.bf16.mxu0 0
    %377 = vmatpush1.bf16.msra.mxu0 %v283
    %378 = vmatprep.subr.bf16.mxu0 0
    %379 = vmatpush1.bf16.msra.mxu0 %v284
    %380 = vmatprep.subr.bf16.mxu0 0
    %381 = vmatpush1.bf16.msra.mxu0 %v285
    %382 = vmatprep.subr.bf16.mxu0 0
    %383 = vmatpush1.bf16.msra.mxu0 %v286
    %384 = vmatprep.subr.bf16.mxu0 0
    %385 = vmatpush1.bf16.msra.mxu0 %v287
    %386 = vmatprep.subr.bf16.mxu0 0
    %387 = vmatpush1.bf16.msra.mxu0 %v288
    %388 = vmatprep.subr.bf16.mxu0 0
    %389 = vmatpush1.bf16.msra.mxu0 %v289
    %390 = vmatprep.subr.bf16.mxu0 0
    %391 = vmatpush1.bf16.msra.mxu0 %v290
    %392 = vmatprep.subr.bf16.mxu0 0
    %393 = vmatpush1.bf16.msra.mxu0 %v291
    %394 = vmatprep.subr.bf16.mxu0 0
    %395 = vmatpush1.bf16.msra.mxu0 %v292
    %396 = vmatprep.subr.bf16.mxu0 0
    %397 = vmatpush1.bf16.msra.mxu0 %v293
    %398 = vmatprep.mubr.bf16.mxu0 %v62
    %399 = vmatmul.mubr.bf16.gmra.mrb[0].mxu0 %v61
    %v400 = vpop.f32.mrb[0].mxu0
    %v401 = vadd.f32 %v361, %v400
    %v402 = vpop.f32.mrb[0].mxu0
    %v403 = vpop.f32.mrb[0].mxu0
    %v404 = vpop.f32.mrb[0].mxu0
    %405 = vdwg.mxu0
    %v406 = vxor.u32 %v401, 2147483648
    %v407 = vmul.f32 %v406, 1.442695
    %v408 = vpow.pop %v407
    %v409 = vadd.f32 %v408, 1.0
    %v410 = vrcp.pop %v409
    %v411 = vmul.f32 1.0, %v410
    %v412 = vpack.c.bf16 %v411, %v411
    %v413 = vld [vmem:[%s3] sm:$0xf]
    %v414 = vld [vmem:[%s3 + $0x4] sm:$0xf]
    %v415 = vld [vmem:[%s3 + $0x8] sm:$0xf]
    %v416 = vld [vmem:[%s3 + $0xc] sm:$0xf]
    %v417 = vld [vmem:[%s3 + $0x10] sm:$0xf]
    %v418 = vld [vmem:[%s3 + $0x14] sm:$0xf]
    %v419 = vld [vmem:[%s3 + $0x18] sm:$0xf]
    %v420 = vld [vmem:[%s3 + $0x1c] sm:$0xf]
    %v421 = vld [vmem:[%s3 + $0x20] sm:$0xf]
    %v422 = vld [vmem:[%s3 + $0x24] sm:$0xf]
    %v423 = vld [vmem:[%s3 + $0x28] sm:$0xf]
    %v424 = vld [vmem:[%s3 + $0x2c] sm:$0xf]
    %v425 = vld [vmem:[%s3 + $0x30] sm:$0xf]
    %v426 = vld [vmem:[%s3 + $0x34] sm:$0xf]
    %v427 = vld [vmem:[%s3 + $0x38] sm:$0xf]
    %v428 = vld [vmem:[%s3 + $0x3c] sm:$0xf]
    %v429 = vld [vmem:[%s4] sm:$0x1]
    %v431 = vlaneseq
    %v432 = vshrl.u32 %v431, 7
    %v433 = vsub.s32 0, %v432
    %v434 = vrot.slane %v429, %v433
    %v452 = vunpack.c.l.b16 %v413
    %v453 = vunpack.c.l.b16 %v414
    %v454 = vunpack.c.l.b16 %v415
    %v455 = vunpack.c.l.b16 %v416
    %v456 = vunpack.c.l.b16 %v417
    %v457 = vunpack.c.l.b16 %v418
    %v458 = vunpack.c.l.b16 %v419
    %v459 = vunpack.c.l.b16 %v420
    %v460 = vunpack.c.l.b16 %v421
    %v461 = vunpack.c.l.b16 %v422
    %v462 = vunpack.c.l.b16 %v423
    %v463 = vunpack.c.l.b16 %v424
    %v464 = vunpack.c.l.b16 %v425
    %v465 = vunpack.c.l.b16 %v426
    %v466 = vunpack.c.l.b16 %v427
    %v467 = vunpack.c.l.b16 %v428
    %v468 = vpack.c.b16 %v453, %v452
    %v469 = vpack.c.b16 %v455, %v454
    %v470 = vpack.c.b16 %v457, %v456
    %v471 = vpack.c.b16 %v459, %v458
    %v472 = vpack.c.b16 %v461, %v460
    %v473 = vpack.c.b16 %v463, %v462
    %v474 = vpack.c.b16 %v465, %v464
    %v475 = vpack.c.b16 %v467, %v466
    %484 = vmatprep.subr.bf16.mxu0 0
    %485 = vmatpush1.bf16.msra.mxu0 %v468
    %486 = vmatprep.subr.bf16.mxu0 0
    %487 = vmatpush1.bf16.msra.mxu0 %v469
    %488 = vmatprep.subr.bf16.mxu0 0
    %489 = vmatpush1.bf16.msra.mxu0 %v470
    %490 = vmatprep.subr.bf16.mxu0 0
    %491 = vmatpush1.bf16.msra.mxu0 %v471
    %492 = vmatprep.subr.bf16.mxu0 0
    %493 = vmatpush1.bf16.msra.mxu0 %v472
    %494 = vmatprep.subr.bf16.mxu0 0
    %495 = vmatpush1.bf16.msra.mxu0 %v473
    %496 = vmatprep.subr.bf16.mxu0 0
    %497 = vmatpush1.bf16.msra.mxu0 %v474
    %498 = vmatprep.subr.bf16.mxu0 0
    %499 = vmatpush1.bf16.msra.mxu0 %v475
    %500 = vmatprep.subr.bf16.mxu0 0
    %501 = vmatpush1.bf16.msra.mxu0 0
    %502 = vmatprep.subr.bf16.mxu0 0
    %503 = vmatpush1.bf16.msra.mxu0 0
    %504 = vmatprep.subr.bf16.mxu0 0
    %505 = vmatpush1.bf16.msra.mxu0 0
    %506 = vmatprep.subr.bf16.mxu0 0
    %507 = vmatpush1.bf16.msra.mxu0 0
    %508 = vmatprep.subr.bf16.mxu0 0
    %509 = vmatpush1.bf16.msra.mxu0 0
    %510 = vmatprep.subr.bf16.mxu0 0
    %511 = vmatpush1.bf16.msra.mxu0 0
    %512 = vmatprep.subr.bf16.mxu0 0
    %513 = vmatpush1.bf16.msra.mxu0 0
    %514 = vmatprep.subr.bf16.mxu0 0
    %515 = vmatpush1.bf16.msra.mxu0 0
    %516 = vmatprep.mubr.bf16.mxu0 0
    %517 = vmatmul.mubr.bf16.gmra.mrb[0].mxu0 %v412
    %v518 = vpop.f32.mrb[0].mxu0
    %v519 = vadd.f32 %v434, %v518
    %v520 = vpop.f32.mrb[0].mxu0
    %v521 = vpop.f32.mrb[0].mxu0
    %v522 = vpop.f32.mrb[0].mxu0
    %523 = vdwg.mxu0
    %524 = vst [vmem:[#allocation5] sm:$0x3] %v519
    // Predicated region
    $region26: #{ffnn_forward_padded.1} parent=1 // pred_check
      _
    $region27: #{ffnn_forward_padded.1} parent=1 // pred_check_branch
      %526 = sbr.rel (0) target = $region29
    $region28: #{ffnn_forward_padded.1} parent=1 // pred_region
      %s528 = ssub.s32 32, 32
      %529 = vsyncadd [#allocation4], %s528
      %s531 = sshll.u32 [#allocation5], 4
      %s532 = int_to_ptr.vmem [resolvable:$true] %s531
      %534 = dma.vmem_to_hbm [thread:$0]  %s532, 32, %s5, [#allocation4]
    $region29: #{ffnn_forward_padded.1} parent=1 // pred_fallthru
      _
    // Predicated region
    $region30: #{ffnn_forward_padded.1} parent=1 // pred_check
      _
    $region31: #{ffnn_forward_padded.1} parent=1 // pred_check_branch
      %536 = sbr.rel (0) target = $region33
    $region32: #{ffnn_forward_padded.1} parent=1 // pred_region
      %537 = dma.done [#allocation4], 32
    $region33: #{ffnn_forward_padded.1} parent=1 // pred_fallthru
      _
    %538 = vsyncpa [#allocation3], 1
    %539 = vsyncpa [#allocation4], 1

</llo_original>
